<compile_context>
chip_gen: v6e
topology: v6e:2x2x1
jax: 0.10.0
libtpu: 0.0.40
codegen_flags: <defaults>
</compile_context>

<pallas_src>
import functools

import jax
import jax.numpy as jnp
from jax.experimental import pallas as pl
from jax.experimental.pallas import tpu as pltpu


def dl_model_kernel(x_ref, wih_ref, gbias_ref, c0_ref, wlin_ref, blin_ref, out_ref,
                    *, nlayers, hidden):
    """Whole forward pass in VMEM: stacked LSTM (1 timestep) -> Linear head."""
    H = hidden
    x = x_ref[...]                                       # (1, H) f32 input at t=0
    acc = blin_ref[...]                                  # (1, H) f32 head accumulator (starts at bias)
    for k in range(nlayers):                             # nlayers is a small static int -> unrolled
        # One MXU matmul per layer; the recurrent term + biases are pre-folded into gbias[k].
        gates = (jnp.dot(x.astype(jnp.bfloat16), wih_ref[k],
                         preferred_element_type=jnp.float32)
                 + gbias_ref[k:k + 1, :])                # (1, 4H) f32, lane order i|f|g|o
        # Two full-vreg transcendentals (EUP), then lane slices of the activated results.
        sig = jax.nn.sigmoid(gates)                      # (1, 4H)
        th = jnp.tanh(gates)                             # (1, 4H)
        i = sig[:, 0 * H:1 * H]
        f = sig[:, 1 * H:2 * H]
        g = th[:, 2 * H:3 * H]
        o = sig[:, 3 * H:4 * H]
        c = f * c0_ref[k:k + 1, :] + i * g               # f32 cell-state update (c0 is the fixed buffer)
        h = o * jnp.tanh(c)                              # (1, H) f32 new hidden state of layer k
        # Head folded into the layer loop: out += h_k @ W_lin_block[k].
        acc = acc + jnp.dot(h.astype(jnp.bfloat16), wlin_ref[k],
                            preferred_element_type=jnp.float32)
        x = h                                            # feed next layer
    # TODO(synk): nn.Dropout(0.2) on h_out is identity in eval mode; no PRNG mask applied here.
    out_ref[...] = acc.astype(out_ref.dtype)             # (1, H) == Linear(h_out.flatten())


def prepare_params(tp):
    """Host-side (one-time) transform of PyTorch-layout params into the kernel's fused layout."""
    nlayers, fourH, H = tp["w_ih"].shape
    # Input-to-hidden weights, pre-transposed: (nlayers, H, 4H); columns keep i|f|g|o order.
    wih_t = jnp.transpose(tp["w_ih"], (0, 2, 1))
    # Recurrent term is constant (seq_len == 1, h0 is a fixed buffer): fold it + both biases, in f32.
    h0 = tp["h0"][:, 0, :]                                                  # (nlayers, H)
    gbias = jnp.einsum("lgh,lh->lg", tp["w_hh"], h0) + tp["b_ih"] + tp["b_hh"]   # (nlayers, 4H)
    # Linear weight (H, nlayers*H) -> per-layer (nlayers, H, H) blocks of the transposed weight.
    wlin = jnp.transpose(tp["lin_w"]).reshape(nlayers, H, H)
    return {
        "wih": wih_t.astype(jnp.bfloat16),                # bf16 weights: MXU-native, half the DMA bytes
        "gbias": gbias.astype(jnp.float32),               # fused gate bias, exact f32
        "c0": tp["c0"][:, 0, :].astype(jnp.float32),      # (nlayers, H)
        "wlin": wlin.astype(jnp.bfloat16),
        "blin": tp["lin_b"].reshape(1, H).astype(jnp.float32),
    }


def dl_model_forward(v1, kp, *, nlayers, bsize):
    x = v1.reshape(1, bsize).astype(jnp.float32)          # tr = v1.view(1, 1, bsize)
    kernel = functools.partial(dl_model_kernel, nlayers=nlayers, hidden=bsize)
    vmem = pl.BlockSpec(memory_space=pltpu.MemorySpace.VMEM)
    out = pl.pallas_call(
        kernel,
        out_shape=jax.ShapeDtypeStruct((1, bsize), jnp.float32),
        in_specs=[vmem] * 6,
        out_specs=vmem,
    )(x, kp["wih"], kp["gbias"], kp["c0"], kp["wlin"], kp["blin"])
    return out[0]                                         # (bsize,), matches torch output shape


def reference_forward(v1, tp, *, nlayers, bsize):
    """Pure-JAX f32 reference using the ORIGINAL PyTorch weight layout and LSTM equations."""
    H = bsize
    x = v1.reshape(H).astype(jnp.float32)
    hs = []
    for k in range(nlayers):
        h_prev = tp["h0"][k, 0]
        c_prev = tp["c0"][k, 0]
        gates = (tp["w_ih"][k] @ x + tp["b_ih"][k]
                 + tp["w_hh"][k] @ h_prev + tp["b_hh"][k])            # (4H,), order i|f|g|o
        i = jax.nn.sigmoid(gates[0 * H:1 * H])
        f = jax.nn.sigmoid(gates[1 * H:2 * H])
        g = jnp.tanh(gates[2 * H:3 * H])
        o = jax.nn.sigmoid(gates[3 * H:4 * H])
        c = f * c_prev + i * g
        h = o * jnp.tanh(c)
        hs.append(h)
        x = h
    h_flat = jnp.concatenate(hs)                          # h_out.flatten(): layer-major
    return tp["lin_w"] @ h_flat + tp["lin_b"]             # dropout is identity in eval mode


def init_torch_params(key, *, nlayers, bsize):
    """Random params in the PyTorch module's native layout (gate order i, f, g, o)."""
    H = bsize
    ks = jax.random.split(key, 8)
    s = 0.1
    return {
        "w_ih": s * jax.random.normal(ks[0], (nlayers, 4 * H, H), jnp.float32),
        "w_hh": s * jax.random.normal(ks[1], (nlayers, 4 * H, H), jnp.float32),
        "b_ih": s * jax.random.normal(ks[2], (nlayers, 4 * H), jnp.float32),
        "b_hh": s * jax.random.normal(ks[3], (nlayers, 4 * H), jnp.float32),
        "h0": jax.random.normal(ks[4], (nlayers, 1, H), jnp.float32),
        "c0": jax.random.normal(ks[5], (nlayers, 1, H), jnp.float32),
        "lin_w": s * jax.random.normal(ks[6], (H, nlayers * H), jnp.float32),
        "lin_b": s * jax.random.normal(ks[7], (H,), jnp.float32),
    }


if __name__ == "__main__":
    bsize = 32
    nlayers = 2

    key = jax.random.PRNGKey(0)
    pkey, xkey = jax.random.split(key)
    torch_params = init_torch_params(pkey, nlayers=nlayers, bsize=bsize)
    kernel_params = prepare_params(torch_params)
    v1 = jax.random.normal(xkey, (bsize,), jnp.float32)

    out = dl_model_forward(v1, kernel_params, nlayers=nlayers, bsize=bsize)
    out = jax.block_until_ready(out)

    ref = reference_forward(v1, torch_params, nlayers=nlayers, bsize=bsize)
    assert out.shape == (bsize,)
    # bf16 weights in the kernel vs pure-f32 reference -> slightly loosened tolerance.
    assert jnp.allclose(out, ref, rtol=2e-2, atol=2e-2), "mismatch vs reference"

    print("KERNEL_OK")
</pallas_src>

<mosaic_0001>
module attributes {stable_mosaic.version = 11 : i64} {
  func.func @dl_model_kernel(%arg0: memref<1x32xf32, #tpu.memory_space<vmem>>, %arg1: memref<2x32x128xbf16, #tpu.memory_space<vmem>>, %arg2: memref<2x128xf32, #tpu.memory_space<vmem>>, %arg3: memref<2x32xf32, #tpu.memory_space<vmem>>, %arg4: memref<2x32x32xbf16, #tpu.memory_space<vmem>>, %arg5: memref<1x32xf32, #tpu.memory_space<vmem>>, %arg6: memref<1x32xf32, #tpu.memory_space<vmem>>) attributes {dimension_semantics = [], scalar_prefetch = 0 : i64, scratch_operands = 0 : i64, tpu.core_type = #tpu.core_type<tc>} {
    %c0 = arith.constant 0 : index
    %c0_0 = arith.constant 0 : index
    %0 = vector.load %arg0[%c0, %c0_0] : memref<1x32xf32, #tpu.memory_space<vmem>>, vector<1x32xf32>
    %c0_1 = arith.constant 0 : index
    %c0_2 = arith.constant 0 : index
    %1 = vector.load %arg5[%c0_1, %c0_2] : memref<1x32xf32, #tpu.memory_space<vmem>>, vector<1x32xf32>
    %2 = arith.truncf %0 : vector<1x32xf32> to vector<1x32xbf16>
    %c0_3 = arith.constant 0 : index
    %c0_4 = arith.constant 0 : index
    %c0_5 = arith.constant 0 : index
    %3 = vector.load %arg1[%c0_3, %c0_4, %c0_5] : memref<2x32x128xbf16, #tpu.memory_space<vmem>>, vector<1x32x128xbf16>
    %4 = vector.shape_cast %3 : vector<1x32x128xbf16> to vector<32x128xbf16>
    %cst = arith.constant dense<0.000000e+00> : vector<1x128xf32>
    %5 = tpu.matmul %2, %4, %cst {dimension_numbers = #tpu.dot_dimension_numbers<[1], [0], [0], [1], [0, 0, 1, 1], [], []>} : vector<1x32xbf16>, vector<32x128xbf16>, vector<1x128xf32> -> vector<1x128xf32>
    %c0_6 = arith.constant 0 : index
    %c0_7 = arith.constant 0 : index
    %6 = vector.load %arg2[%c0_6, %c0_7] : memref<2x128xf32, #tpu.memory_space<vmem>>, vector<1x128xf32>
    %7 = arith.addf %5, %6 : vector<1x128xf32>
    %8 = arith.negf %7 : vector<1x128xf32>
    %9 = math.exp %8 : vector<1x128xf32>
    %cst_8 = arith.constant 1.000000e+00 : f32
    %10 = vector.broadcast %cst_8 : f32 to vector<1x128xf32>
    %11 = arith.addf %10, %9 : vector<1x128xf32>
    %12 = arith.divf %10, %11 : vector<1x128xf32>
    %13 = math.tanh %7 : vector<1x128xf32>
    %14 = vector.extract_strided_slice %12 {offsets = [0, 0], sizes = [1, 32], strides = [1, 1]} : vector<1x128xf32> to vector<1x32xf32>
    %15 = vector.extract_strided_slice %12 {offsets = [0, 32], sizes = [1, 32], strides = [1, 1]} : vector<1x128xf32> to vector<1x32xf32>
    %16 = vector.extract_strided_slice %13 {offsets = [0, 64], sizes = [1, 32], strides = [1, 1]} : vector<1x128xf32> to vector<1x32xf32>
    %17 = vector.extract_strided_slice %12 {offsets = [0, 96], sizes = [1, 32], strides = [1, 1]} : vector<1x128xf32> to vector<1x32xf32>
    %c0_9 = arith.constant 0 : index
    %c0_10 = arith.constant 0 : index
    %18 = vector.load %arg3[%c0_9, %c0_10] : memref<2x32xf32, #tpu.memory_space<vmem>>, vector<1x32xf32>
    %19 = arith.mulf %15, %18 : vector<1x32xf32>
    %20 = arith.mulf %14, %16 : vector<1x32xf32>
    %21 = arith.addf %19, %20 : vector<1x32xf32>
    %22 = math.tanh %21 : vector<1x32xf32>
    %23 = arith.mulf %17, %22 : vector<1x32xf32>
    %24 = arith.truncf %23 : vector<1x32xf32> to vector<1x32xbf16>
    %c0_11 = arith.constant 0 : index
    %c0_12 = arith.constant 0 : index
    %c0_13 = arith.constant 0 : index
    %25 = vector.load %arg4[%c0_11, %c0_12, %c0_13] : memref<2x32x32xbf16, #tpu.memory_space<vmem>>, vector<1x32x32xbf16>
    %26 = vector.shape_cast %25 : vector<1x32x32xbf16> to vector<32x32xbf16>
    %cst_14 = arith.constant dense<0.000000e+00> : vector<1x32xf32>
    %27 = tpu.matmul %24, %26, %cst_14 {dimension_numbers = #tpu.dot_dimension_numbers<[1], [0], [0], [1], [0, 0, 1, 1], [], []>} : vector<1x32xbf16>, vector<32x32xbf16>, vector<1x32xf32> -> vector<1x32xf32>
    %28 = arith.addf %1, %27 : vector<1x32xf32>
    %29 = arith.truncf %23 : vector<1x32xf32> to vector<1x32xbf16>
    %c1 = arith.constant 1 : index
    %c0_15 = arith.constant 0 : index
    %c0_16 = arith.constant 0 : index
    %30 = vector.load %arg1[%c1, %c0_15, %c0_16] : memref<2x32x128xbf16, #tpu.memory_space<vmem>>, vector<1x32x128xbf16>
    %31 = vector.shape_cast %30 : vector<1x32x128xbf16> to vector<32x128xbf16>
    %cst_17 = arith.constant dense<0.000000e+00> : vector<1x128xf32>
    %32 = tpu.matmul %29, %31, %cst_17 {dimension_numbers = #tpu.dot_dimension_numbers<[1], [0], [0], [1], [0, 0, 1, 1], [], []>} : vector<1x32xbf16>, vector<32x128xbf16>, vector<1x128xf32> -> vector<1x128xf32>
    %c1_18 = arith.constant 1 : index
    %c0_19 = arith.constant 0 : index
    %33 = vector.load %arg2[%c1_18, %c0_19] : memref<2x128xf32, #tpu.memory_space<vmem>>, vector<1x128xf32>
    %34 = arith.addf %32, %33 : vector<1x128xf32>
    %35 = arith.negf %34 : vector<1x128xf32>
    %36 = math.exp %35 : vector<1x128xf32>
    %cst_20 = arith.constant 1.000000e+00 : f32
    %37 = vector.broadcast %cst_20 : f32 to vector<1x128xf32>
    %38 = arith.addf %37, %36 : vector<1x128xf32>
    %39 = arith.divf %37, %38 : vector<1x128xf32>
    %40 = math.tanh %34 : vector<1x128xf32>
    %41 = vector.extract_strided_slice %39 {offsets = [0, 0], sizes = [1, 32], strides = [1, 1]} : vector<1x128xf32> to vector<1x32xf32>
    %42 = vector.extract_strided_slice %39 {offsets = [0, 32], sizes = [1, 32], strides = [1, 1]} : vector<1x128xf32> to vector<1x32xf32>
    %43 = vector.extract_strided_slice %40 {offsets = [0, 64], sizes = [1, 32], strides = [1, 1]} : vector<1x128xf32> to vector<1x32xf32>
    %44 = vector.extract_strided_slice %39 {offsets = [0, 96], sizes = [1, 32], strides = [1, 1]} : vector<1x128xf32> to vector<1x32xf32>
    %c1_21 = arith.constant 1 : index
    %c0_22 = arith.constant 0 : index
    %45 = vector.load %arg3[%c1_21, %c0_22] : memref<2x32xf32, #tpu.memory_space<vmem>>, vector<1x32xf32>
    %46 = arith.mulf %42, %45 : vector<1x32xf32>
    %47 = arith.mulf %41, %43 : vector<1x32xf32>
    %48 = arith.addf %46, %47 : vector<1x32xf32>
    %49 = math.tanh %48 : vector<1x32xf32>
    %50 = arith.mulf %44, %49 : vector<1x32xf32>
    %51 = arith.truncf %50 : vector<1x32xf32> to vector<1x32xbf16>
    %c1_23 = arith.constant 1 : index
    %c0_24 = arith.constant 0 : index
    %c0_25 = arith.constant 0 : index
    %52 = vector.load %arg4[%c1_23, %c0_24, %c0_25] : memref<2x32x32xbf16, #tpu.memory_space<vmem>>, vector<1x32x32xbf16>
    %53 = vector.shape_cast %52 : vector<1x32x32xbf16> to vector<32x32xbf16>
    %cst_26 = arith.constant dense<0.000000e+00> : vector<1x32xf32>
    %54 = tpu.matmul %51, %53, %cst_26 {dimension_numbers = #tpu.dot_dimension_numbers<[1], [0], [0], [1], [0, 0, 1, 1], [], []>} : vector<1x32xbf16>, vector<32x32xbf16>, vector<1x32xf32> -> vector<1x32xf32>
    %55 = arith.addf %28, %54 : vector<1x32xf32>
    %c0_27 = arith.constant 0 : index
    %c0_28 = arith.constant 0 : index
    %56 = vector.load %arg6[%c0_27, %c0_28] : memref<1x32xf32, #tpu.memory_space<vmem>>, vector<1x32xf32>
    tpu.vector_store %arg6[%c0_27, %c0_28], %55 {strides = array<i32>} : memref<1x32xf32, #tpu.memory_space<vmem>>, vector<1x32xf32>,
    return
  }
}

</mosaic_0001>

<llo_original>
// kernel: tpu_custom_call.1
$region0: #{tpu_custom_call.1}
  #allocation0 [shape = 'u32[]', space=smem, size = 0x4, offset = 0x4, fixed_abs, tag = 'smem constant byte address 0x4 - core index']
  #allocation1 [shape = 'u32[144,128]{1,0:T(1,128)}', space=vmem, size = 0x12000, scoped, tag = 'internal scratch']
  %s0 = inlined_call_operand.hbm [shape: f32[1,32], index: 0, kind: input, shape index: {}]
  %s1 = inlined_call_operand.hbm [shape: bf16[2,32,128], index: 1, kind: input, shape index: {}]
  %s2 = inlined_call_operand.vmem [shape: f32[2,128], index: 2, kind: input, shape index: {}]
  %s3 = inlined_call_operand.vmem [shape: f32[2,32], index: 3, kind: input, shape index: {}]
  %s4 = inlined_call_operand.hbm [shape: bf16[2,32,32], index: 4, kind: input, shape index: {}]
  %s5 = inlined_call_operand.vmem [shape: f32[1,32], index: 5, kind: input, shape index: {}]
  %s6 = inlined_call_operand.hbm [shape: f32[1,32], index: 6, kind: output, shape index: {}]
  %s7 = sld [smem:[#allocation0]]
  $region46: #{tpu_custom_call.1} parent=0
    _
  %s9 = ssub.s32 1, %s7
  %s10 = scalar_select 0, %s9, %s7
  $region1: #{tpu_custom_call.1} parent=0
    #allocation2 [shape = 'u8[512]{0}', space=vmem, size = 0x400, scoped, tag = 'input window, operand 0, single buffered']
    #allocation3 [shape = 's32[1]{0}', space=sflag, size = 0x4, scoped, tag = 'scoped memory for tpu_custom_call.1']
    #allocation4 [shape = 's32[1]{0}', space=sflag, size = 0x4, scoped, tag = 'scoped memory for tpu_custom_call.1']
    #allocation5 [shape = 'u8[16384]{0}', space=vmem, size = 0x4000, scoped, tag = 'input window, operand 1, single buffered']
    #allocation6 [shape = 's32[1]{0}', space=sflag, size = 0x4, scoped, tag = 'scoped memory for tpu_custom_call.1']
    #allocation7 [shape = 'u8[16384]{0}', space=vmem, size = 0x4000, scoped, tag = 'input window, operand 4, single buffered']
    #allocation8 [shape = 'u8[512]{0}', space=vmem, size = 0x400, scoped, tag = 'output window, operand 0, single buffered']
    %11 = vsyncpa [#allocation3], 0
    %12 = vsyncpa [#allocation6], 0
    %13 = vsyncpa [#allocation4], 0
    // Predicated region
    $region2: #{tpu_custom_call.1} parent=1 // pred_check
      _
    $region3: #{tpu_custom_call.1} parent=1 // pred_check_branch
      %15 = sbr.rel (0) target = $region5
    $region4: #{tpu_custom_call.1} parent=1 // pred_region
      %s17 = ssub.s32 16, 16
      %18 = vsyncadd [#allocation3], %s17
      %s20 = sshll.u32 [#allocation2], 4
      %s21 = int_to_ptr.vmem [resolvable:$true] %s20
      %23 = dma.hbm_to_vmem [thread:$0]  %s0, 16, %s21, [#allocation3]
    $region5: #{tpu_custom_call.1} parent=1 // pred_fallthru
      _
    // Predicated region
    $region6: #{tpu_custom_call.1} parent=1 // pred_check
      _
    $region7: #{tpu_custom_call.1} parent=1 // pred_check_branch
      %25 = sbr.rel (0) target = $region9
    $region8: #{tpu_custom_call.1} parent=1 // pred_region
      %s27 = ssub.s32 512, 512
      %28 = vsyncadd [#allocation6], %s27
      %s29 = sshll.u32 [#allocation5], 4
      %s30 = int_to_ptr.vmem [resolvable:$true] %s29
      %35 = dma.hbm_to_vmem [thread:$0]  %s1, 512, %s30, [#allocation6], 64, 64, 4
    $region9: #{tpu_custom_call.1} parent=1 // pred_fallthru
      _
    // Predicated region
    $region10: #{tpu_custom_call.1} parent=1 // pred_check
      _
    $region11: #{tpu_custom_call.1} parent=1 // pred_check_branch
      %37 = sbr.rel (0) target = $region13
    $region12: #{tpu_custom_call.1} parent=1 // pred_region
      _
    $region13: #{tpu_custom_call.1} parent=1 // pred_fallthru
      _
    // Predicated region
    $region14: #{tpu_custom_call.1} parent=1 // pred_check
      _
    $region15: #{tpu_custom_call.1} parent=1 // pred_check_branch
      %39 = sbr.rel (0) target = $region17
    $region16: #{tpu_custom_call.1} parent=1 // pred_region
      _
    $region17: #{tpu_custom_call.1} parent=1 // pred_fallthru
      _
    // Predicated region
    $region18: #{tpu_custom_call.1} parent=1 // pred_check
      _
    $region19: #{tpu_custom_call.1} parent=1 // pred_check_branch
      %41 = sbr.rel (0) target = $region21
    $region20: #{tpu_custom_call.1} parent=1 // pred_region
      %s43 = ssub.s32 512, 512
      %44 = vsyncadd [#allocation6], %s43
      %s45 = sshll.u32 [#allocation7], 4
      %s46 = int_to_ptr.vmem [resolvable:$true] %s45
      %51 = dma.hbm_to_vmem [thread:$0]  %s4, 512, %s46, [#allocation6], 64, 64, 4
    $region21: #{tpu_custom_call.1} parent=1 // pred_fallthru
      _
    // Predicated region
    $region22: #{tpu_custom_call.1} parent=1 // pred_check
      _
    $region23: #{tpu_custom_call.1} parent=1 // pred_check_branch
      %53 = sbr.rel (0) target = $region25
    $region24: #{tpu_custom_call.1} parent=1 // pred_region
      _
    $region25: #{tpu_custom_call.1} parent=1 // pred_fallthru
      _
    // Predicated region
    $region26: #{tpu_custom_call.1} parent=1 // pred_check
      _
    $region27: #{tpu_custom_call.1} parent=1 // pred_check_branch
      %55 = sbr.rel (0) target = $region29
    $region28: #{tpu_custom_call.1} parent=1 // pred_region
      %56 = dma.done [#allocation3], 16
    $region29: #{tpu_custom_call.1} parent=1 // pred_fallthru
      _
    // Predicated region
    $region30: #{tpu_custom_call.1} parent=1 // pred_check
      _
    $region31: #{tpu_custom_call.1} parent=1 // pred_check_branch
      %58 = sbr.rel (0) target = $region33
    $region32: #{tpu_custom_call.1} parent=1 // pred_region
      %59 = dma.done [#allocation6], 512
    $region33: #{tpu_custom_call.1} parent=1 // pred_fallthru
      _
    // Predicated region
    $region34: #{tpu_custom_call.1} parent=1 // pred_check
      _
    $region35: #{tpu_custom_call.1} parent=1 // pred_check_branch
      %61 = sbr.rel (0) target = $region37
    $region36: #{tpu_custom_call.1} parent=1 // pred_region
      %62 = dma.done [#allocation6], 512
    $region37: #{tpu_custom_call.1} parent=1 // pred_fallthru
      _
    %v64 = vld [vmem:[#allocation2] sm:$0x1]
    %v65 = vld [vmem:[%s5] sm:$0x1]
    %v66 = vpack.c.bf16 %v64, %v64
    %v67 = vld [vmem:[#allocation5] sm:$0xf]
    %v68 = vld [vmem:[#allocation5 + $0x4] sm:$0xf]
    %v69 = vld [vmem:[#allocation5 + $0x8] sm:$0xf]
    %v70 = vld [vmem:[#allocation5 + $0xc] sm:$0xf]
    %v71 = vld [vmem:[%s2] sm:$0x1]
    %v76 = vunpack.c.l.b16 %v67
    %v77 = vunpack.c.l.b16 %v68
    %v78 = vunpack.c.l.b16 %v69
    %v79 = vunpack.c.l.b16 %v70
    %v80 = vpack.c.b16 %v77, %v76
    %v81 = vpack.c.b16 %v79, %v78
    %vm84 = vcmask 261120
    %v86 = vsel %vm84, %v66, 0
    %88 = vmatprep.subr.bf16.mxu0 0
    %89 = vmatpush1.bf16.msra.mxu0 0
    %90 = vmatprep.subr.bf16.mxu0 0
    %91 = vmatpush1.bf16.msra.mxu0 0
    %92 = vmatprep.subr.bf16.mxu0 0
    %93 = vmatpush1.bf16.msra.mxu0 0
    %94 = vmatprep.subr.bf16.mxu0 0
    %95 = vmatpush1.bf16.msra.mxu0 0
    %96 = vmatprep.subr.bf16.mxu0 0
    %97 = vmatpush1.bf16.msra.mxu0 0
    %98 = vmatprep.subr.bf16.mxu0 0
    %99 = vmatpush1.bf16.msra.mxu0 0
    %100 = vmatprep.subr.bf16.mxu0 0
    %101 = vmatpush1.bf16.msra.mxu0 %v81
    %102 = vmatprep.subr.bf16.mxu0 0
    %103 = vmatpush1.bf16.msra.mxu0 %v80
    %104 = vmatprep.subr.bf16.mxu0 0
    %105 = vmatpush2.bf16.msra.mxu0 0
    %106 = vmatprep.subr.bf16.mxu0 0
    %107 = vmatpush2.bf16.msra.mxu0 0
    %108 = vmatprep.subr.bf16.mxu0 0
    %109 = vmatpush2.bf16.msra.mxu0 0
    %110 = vmatprep.subr.bf16.mxu0 0
    %111 = vmatpush2.bf16.msra.mxu0 0
    %112 = vmatprep.subr.bf16.mxu0 0
    %113 = vmatpush2.bf16.msra.mxu0 0
    %114 = vmatprep.subr.bf16.mxu0 0
    %115 = vmatpush2.bf16.msra.mxu0 0
    %116 = vmatprep.subr.bf16.mxu0 0
    %117 = vmatpush2.bf16.msra.mxu0 0
    %118 = vmatprep.subr.bf16.mxu0 0
    %119 = vmatpush2.bf16.msra.mxu0 0
    %120 = vmatprep.mubr.bf16.mxu0 0
    %121 = vmatmul.mubr.bf16.gmra.mxu0 %v86
    %v122 = vpop.f32.mrf.mxu0
    %v123 = vadd.f32 %v71, %v122
    %v124 = vpop.f32.mrf.mxu0
    %v125 = vpop.f32.mrf.mxu0
    %v126 = vpop.f32.mrf.mxu0
    %127 = vdwg.mxu0
    %v128 = vxor.u32 %v123, 2147483648
    %v129 = vmul.f32 %v128, 1.442695
    %v130 = vpow.pop %v129
    %v131 = vadd.f32 %v130, 1.0
    %v132 = vrcp.pop %v131
    %v133 = vmul.f32 1.0, %v132
    %v134 = vtanh.pop %v123
    %v135 = vld [vmem:[%s3] sm:$0x1]
    %137 = vrot.lane.b32.xlu0 %v135, 32
    %v138 = vpop.permute.xlu0 %137
    %v140 = vmul.f32 %v133, %v138
    %142 = vrot.lane.b32.xlu0 %v134, 64
    %v143 = vpop.permute.xlu0 %142
    %v145 = vmul.f32 %v133, %v143
    %147 = vrot.lane.b32.xlu0 %v145, 32
    %v148 = vpop.permute.xlu0 %147
    %v150 = vadd.f32 %v140, %v148
    %v151 = vtanh.pop %v150
    %153 = vrot.lane.b32.xlu0 %v151, 64
    %v154 = vpop.permute.xlu0 %153
    %v156 = vmul.f32 %v133, %v154
    %v157 = vpack.c.bf16 %v156, %v156
    %v158 = vld [vmem:[#allocation7] sm:$0xf]
    %v159 = vld [vmem:[#allocation7 + $0x4] sm:$0xf]
    %v160 = vld [vmem:[#allocation7 + $0x8] sm:$0xf]
    %v161 = vld [vmem:[#allocation7 + $0xc] sm:$0xf]
    %163 = vrot.lane.b32.xlu0 %v157, 32
    %v164 = vpop.permute.xlu0 %163
    %v169 = vunpack.c.l.b16 %v158
    %v170 = vunpack.c.l.b16 %v159
    %v171 = vunpack.c.l.b16 %v160
    %v172 = vunpack.c.l.b16 %v161
    %v173 = vpack.c.b16 %v170, %v169
    %v174 = vpack.c.b16 %v172, %v171
    %v178 = vsel %vm84, %v164, 0
    %180 = vmatprep.subr.bf16.mxu0 0
    %181 = vmatpush1.bf16.msra.mxu0 0
    %182 = vmatprep.subr.bf16.mxu0 0
    %183 = vmatpush1.bf16.msra.mxu0 0
    %184 = vmatprep.subr.bf16.mxu0 0
    %185 = vmatpush1.bf16.msra.mxu0 0
    %186 = vmatprep.subr.bf16.mxu0 0
    %187 = vmatpush1.bf16.msra.mxu0 0
    %188 = vmatprep.subr.bf16.mxu0 0
    %189 = vmatpush1.bf16.msra.mxu0 0
    %190 = vmatprep.subr.bf16.mxu0 0
    %191 = vmatpush1.bf16.msra.mxu0 0
    %192 = vmatprep.subr.bf16.mxu0 0
    %193 = vmatpush1.bf16.msra.mxu0 %v174
    %194 = vmatprep.subr.bf16.mxu0 0
    %195 = vmatpush1.bf16.msra.mxu0 %v173
    %196 = vmatprep.subr.bf16.mxu0 0
    %197 = vmatpush2.bf16.msra.mxu0 0
    %198 = vmatprep.subr.bf16.mxu0 0
    %199 = vmatpush2.bf16.msra.mxu0 0
    %200 = vmatprep.subr.bf16.mxu0 0
    %201 = vmatpush2.bf16.msra.mxu0 0
    %202 = vmatprep.subr.bf16.mxu0 0
    %203 = vmatpush2.bf16.msra.mxu0 0
    %204 = vmatprep.subr.bf16.mxu0 0
    %205 = vmatpush2.bf16.msra.mxu0 0
    %206 = vmatprep.subr.bf16.mxu0 0
    %207 = vmatpush2.bf16.msra.mxu0 0
    %208 = vmatprep.subr.bf16.mxu0 0
    %209 = vmatpush2.bf16.msra.mxu0 0
    %210 = vmatprep.subr.bf16.mxu0 0
    %211 = vmatpush2.bf16.msra.mxu0 0
    %212 = vmatprep.mubr.bf16.mxu0 0
    %213 = vmatmul.mubr.bf16.gmra.mxu0 %v178
    %v214 = vpop.f32.mrf.mxu0
    %v215 = vadd.f32 0.0, %v214
    %v216 = vpop.f32.mrf.mxu0
    %v217 = vpop.f32.mrf.mxu0
    %v218 = vpop.f32.mrf.mxu0
    %219 = vdwg.mxu0
    %v220 = vadd.f32 %v65, %v215
    %s221 = scalar_lea.vmem [#allocation5], 16
    %v222 = vld [vmem:[%s221] sm:$0xf]
    %v223 = vld [vmem:[%s221 + $0x4] sm:$0xf]
    %v224 = vld [vmem:[%s221 + $0x8] sm:$0xf]
    %v225 = vld [vmem:[%s221 + $0xc] sm:$0xf]
    %v226 = vld [vmem:[%s2 + $0x1] sm:$0x1]
    %v231 = vunpack.c.l.b16 %v222
    %v232 = vunpack.c.l.b16 %v223
    %v233 = vunpack.c.l.b16 %v224
    %v234 = vunpack.c.l.b16 %v225
    %v235 = vpack.c.b16 %v232, %v231
    %v236 = vpack.c.b16 %v234, %v233
    %239 = vmatprep.subr.bf16.mxu0 0
    %240 = vmatpush1.bf16.msra.mxu0 0
    %241 = vmatprep.subr.bf16.mxu0 0
    %242 = vmatpush1.bf16.msra.mxu0 0
    %243 = vmatprep.subr.bf16.mxu0 0
    %244 = vmatpush1.bf16.msra.mxu0 0
    %245 = vmatprep.subr.bf16.mxu0 0
    %246 = vmatpush1.bf16.msra.mxu0 0
    %247 = vmatprep.subr.bf16.mxu0 0
    %248 = vmatpush1.bf16.msra.mxu0 0
    %249 = vmatprep.subr.bf16.mxu0 0
    %250 = vmatpush1.bf16.msra.mxu0 0
    %251 = vmatprep.subr.bf16.mxu0 0
    %252 = vmatpush1.bf16.msra.mxu0 %v236
    %253 = vmatprep.subr.bf16.mxu0 0
    %254 = vmatpush1.bf16.msra.mxu0 %v235
    %255 = vmatprep.subr.bf16.mxu0 0
    %256 = vmatpush2.bf16.msra.mxu0 0
    %257 = vmatprep.subr.bf16.mxu0 0
    %258 = vmatpush2.bf16.msra.mxu0 0
    %259 = vmatprep.subr.bf16.mxu0 0
    %260 = vmatpush2.bf16.msra.mxu0 0
    %261 = vmatprep.subr.bf16.mxu0 0
    %262 = vmatpush2.bf16.msra.mxu0 0
    %263 = vmatprep.subr.bf16.mxu0 0
    %264 = vmatpush2.bf16.msra.mxu0 0
    %265 = vmatprep.subr.bf16.mxu0 0
    %266 = vmatpush2.bf16.msra.mxu0 0
    %267 = vmatprep.subr.bf16.mxu0 0
    %268 = vmatpush2.bf16.msra.mxu0 0
    %269 = vmatprep.subr.bf16.mxu0 0
    %270 = vmatpush2.bf16.msra.mxu0 0
    %271 = vmatprep.mubr.bf16.mxu0 0
    %272 = vmatmul.mubr.bf16.gmra.mxu0 %v178
    %v273 = vpop.f32.mrf.mxu0
    %v274 = vadd.f32 %v226, %v273
    %v275 = vpop.f32.mrf.mxu0
    %v276 = vpop.f32.mrf.mxu0
    %v277 = vpop.f32.mrf.mxu0
    %278 = vdwg.mxu0
    %v279 = vxor.u32 %v274, 2147483648
    %v280 = vmul.f32 %v279, 1.442695
    %v281 = vpow.pop %v280
    %v282 = vadd.f32 %v281, 1.0
    %v283 = vrcp.pop %v282
    %v284 = vmul.f32 1.0, %v283
    %v285 = vtanh.pop %v274
    %v286 = vld [vmem:[%s3 + $0x1] sm:$0x1]
    %288 = vrot.lane.b32.xlu0 %v286, 32
    %v289 = vpop.permute.xlu0 %288
    %v291 = vmul.f32 %v284, %v289
    %293 = vrot.lane.b32.xlu0 %v285, 64
    %v294 = vpop.permute.xlu0 %293
    %v296 = vmul.f32 %v284, %v294
    %298 = vrot.lane.b32.xlu0 %v296, 32
    %v299 = vpop.permute.xlu0 %298
    %v301 = vadd.f32 %v291, %v299
    %v302 = vtanh.pop %v301
    %304 = vrot.lane.b32.xlu0 %v302, 64
    %v305 = vpop.permute.xlu0 %304
    %v307 = vmul.f32 %v284, %v305
    %v308 = vpack.c.bf16 %v307, %v307
    %s309 = scalar_lea.vmem [#allocation7], 16
    %v310 = vld [vmem:[%s309] sm:$0xf]
    %v311 = vld [vmem:[%s309 + $0x4] sm:$0xf]
    %v312 = vld [vmem:[%s309 + $0x8] sm:$0xf]
    %v313 = vld [vmem:[%s309 + $0xc] sm:$0xf]
    %315 = vrot.lane.b32.xlu0 %v308, 32
    %v316 = vpop.permute.xlu0 %315
    %v321 = vunpack.c.l.b16 %v310
    %v322 = vunpack.c.l.b16 %v311
    %v323 = vunpack.c.l.b16 %v312
    %v324 = vunpack.c.l.b16 %v313
    %v325 = vpack.c.b16 %v322, %v321
    %v326 = vpack.c.b16 %v324, %v323
    %v330 = vsel %vm84, %v316, 0
    %332 = vmatprep.subr.bf16.mxu0 0
    %333 = vmatpush1.bf16.msra.mxu0 0
    %334 = vmatprep.subr.bf16.mxu0 0
    %335 = vmatpush1.bf16.msra.mxu0 0
    %336 = vmatprep.subr.bf16.mxu0 0
    %337 = vmatpush1.bf16.msra.mxu0 0
    %338 = vmatprep.subr.bf16.mxu0 0
    %339 = vmatpush1.bf16.msra.mxu0 0
    %340 = vmatprep.subr.bf16.mxu0 0
    %341 = vmatpush1.bf16.msra.mxu0 0
    %342 = vmatprep.subr.bf16.mxu0 0
    %343 = vmatpush1.bf16.msra.mxu0 0
    %344 = vmatprep.subr.bf16.mxu0 0
    %345 = vmatpush1.bf16.msra.mxu0 %v326
    %346 = vmatprep.subr.bf16.mxu0 0
    %347 = vmatpush1.bf16.msra.mxu0 %v325
    %348 = vmatprep.subr.bf16.mxu0 0
    %349 = vmatpush2.bf16.msra.mxu0 0
    %350 = vmatprep.subr.bf16.mxu0 0
    %351 = vmatpush2.bf16.msra.mxu0 0
    %352 = vmatprep.subr.bf16.mxu0 0
    %353 = vmatpush2.bf16.msra.mxu0 0
    %354 = vmatprep.subr.bf16.mxu0 0
    %355 = vmatpush2.bf16.msra.mxu0 0
    %356 = vmatprep.subr.bf16.mxu0 0
    %357 = vmatpush2.bf16.msra.mxu0 0
    %358 = vmatprep.subr.bf16.mxu0 0
    %359 = vmatpush2.bf16.msra.mxu0 0
    %360 = vmatprep.subr.bf16.mxu0 0
    %361 = vmatpush2.bf16.msra.mxu0 0
    %362 = vmatprep.subr.bf16.mxu0 0
    %363 = vmatpush2.bf16.msra.mxu0 0
    %364 = vmatprep.mubr.bf16.mxu0 0
    %365 = vmatmul.mubr.bf16.gmra.mxu0 %v330
    %v366 = vpop.f32.mrf.mxu0
    %v367 = vadd.f32 0.0, %v366
    %v368 = vpop.f32.mrf.mxu0
    %v369 = vpop.f32.mrf.mxu0
    %v370 = vpop.f32.mrf.mxu0
    %371 = vdwg.mxu0
    %v372 = vadd.f32 %v220, %v367
    %vm373 = vcmask 253952
    %374 = vst.msk [vmem:[#allocation8] sm:$0x1] %vm373, %v372
    // Predicated region
    $region38: #{tpu_custom_call.1} parent=1 // pred_check
      _
    $region39: #{tpu_custom_call.1} parent=1 // pred_check_branch
      %376 = sbr.rel (0) target = $region41
    $region40: #{tpu_custom_call.1} parent=1 // pred_region
      %s378 = ssub.s32 16, 16
      %379 = vsyncadd [#allocation4], %s378
      %s381 = sshll.u32 [#allocation8], 4
      %s382 = int_to_ptr.vmem [resolvable:$true] %s381
      %384 = dma.vmem_to_hbm [thread:$0]  %s382, 16, %s6, [#allocation4]
    $region41: #{tpu_custom_call.1} parent=1 // pred_fallthru
      _
    // Predicated region
    $region42: #{tpu_custom_call.1} parent=1 // pred_check
      _
    $region43: #{tpu_custom_call.1} parent=1 // pred_check_branch
      %386 = sbr.rel (0) target = $region45
    $region44: #{tpu_custom_call.1} parent=1 // pred_region
      %387 = dma.done [#allocation4], 16
    $region45: #{tpu_custom_call.1} parent=1 // pred_fallthru
      _
    %388 = vsyncpa [#allocation3], 1
    %389 = vsyncpa [#allocation6], 1
    %390 = vsyncpa [#allocation4], 1

</llo_original>
